<compile_context>
chip_gen: v7x
topology: tpu7x:2x2x1
jax: 0.10.0
libtpu: 0.0.40
codegen_flags: <defaults>
</compile_context>

<pallas_src>
import functools

import jax
import jax.numpy as jnp
from jax.experimental import pallas as pl
from jax.experimental.pallas import tpu as pltpu


def _round_up(x: int, m: int) -> int:
    return ((x + m - 1) // m) * m


def _fused_kernel_single_k(x_ref, w_ref, b_ref, n_ref, o_ref):
    """Whole K fits in one tile: no scratch, no control flow, one store."""
    o_ref[...] = (
        jnp.dot(x_ref[...], w_ref[...], preferred_element_type=jnp.float32)
        + b_ref[...]
        + n_ref[...]
    ).astype(o_ref.dtype)


def _fused_kernel_multi_k(x_ref, w_ref, b_ref, n_ref, o_ref, acc_ref):
    """K reduced over grid axis 2 with an f32 VMEM accumulator."""
    k = pl.program_id(2)

    @pl.when(k == 0)
    def _init():
        acc_ref[...] = jnp.zeros_like(acc_ref)

    acc_ref[...] += jnp.dot(
        x_ref[...], w_ref[...], preferred_element_type=jnp.float32
    )

    @pl.when(k == pl.num_programs(2) - 1)
    def _finalize():
        # Bias broadcast + gaussian noise fused into the single output store.
        o_ref[...] = (acc_ref[...] + b_ref[...] + n_ref[...]).astype(o_ref.dtype)


@functools.partial(
    jax.jit, static_argnames=("tm", "tn", "tk", "use_bf16_operands")
)
def linear_plus_noise(x, w, b, key, *, tm=None, tn=256, tk=256,
                      use_bf16_operands=False):
    """y = x @ W + b + N(0, 1) noise.

    x: (B, K), w: (K, N), b: (N,), key: jax PRNG key.
    (PyTorch Linear weight is (out, in); pass it here already transposed.)
    Returns (y[:B, :N], noise[:B, :N]).
    """
    B, K = x.shape
    K2, N = w.shape
    assert K == K2 and b.shape == (N,)

    op_dtype = jnp.bfloat16 if use_bf16_operands else jnp.float32

    # --- tile sizes: sublane-aligned M, lane-aligned N/K -----------------
    if tm is None:
        tm = min(128, _round_up(B, 8))          # >= 8 rows -> unmasked stores
    tn = min(tn, _round_up(N, 128))
    tk = min(tk, _round_up(K, 128))

    Mp = _round_up(B, tm)
    Np = _round_up(N, tn)
    Kp = _round_up(K, tk)

    # --- pad operands only when required (aligned case: zero extra copies) --
    if (B != Mp) or (K != Kp):
        xp = jnp.zeros((Mp, Kp), op_dtype).at[:B, :K].set(x.astype(op_dtype))
    else:
        xp = x.astype(op_dtype)

    if (K != Kp) or (N != Np):
        wp = jnp.zeros((Kp, Np), op_dtype).at[:K, :N].set(w.astype(op_dtype))
    else:
        wp = w.astype(op_dtype)

    if N != Np:
        bp = jnp.zeros((1, Np), jnp.float32).at[0, :N].set(b.astype(jnp.float32))
    else:
        bp = b.astype(jnp.float32).reshape(1, N)

    # Gaussian noise generated at the padded shape directly (no pad copy).
    noise = jax.random.normal(key, (Mp, Np), dtype=jnp.float32)

    single_k = (Kp == tk)
    itemsize = jnp.dtype(op_dtype).itemsize

    if single_k:
        grid = (Mp // tm, Np // tn)
        in_specs = [
            pl.BlockSpec((tm, tk), lambda i, j: (i, 0)),    # x
            pl.BlockSpec((tk, tn), lambda i, j: (0, j)),    # w
            pl.BlockSpec((1, tn), lambda i, j: (0, j)),     # bias
            pl.BlockSpec((tm, tn), lambda i, j: (i, j)),    # noise
        ]
        out_specs = pl.BlockSpec((tm, tn), lambda i, j: (i, j))
        scratch_shapes = []
        dim_sems = ("parallel", "parallel")
        kernel = _fused_kernel_single_k
    else:
        grid = (Mp // tm, Np // tn, Kp // tk)
        in_specs = [
            pl.BlockSpec((tm, tk), lambda i, j, k: (i, k)),   # x
            pl.BlockSpec((tk, tn), lambda i, j, k: (k, j)),   # w
            pl.BlockSpec((1, tn), lambda i, j, k: (0, j)),    # bias
            pl.BlockSpec((tm, tn), lambda i, j, k: (i, j)),   # noise
        ]
        out_specs = pl.BlockSpec((tm, tn), lambda i, j, k: (i, j))
        scratch_shapes = [pltpu.VMEM((tm, tn), jnp.float32)]
        dim_sems = ("parallel", "parallel", "arbitrary")
        kernel = _fused_kernel_multi_k

    grid_spec = pltpu.PrefetchScalarGridSpec(
        num_scalar_prefetch=0,
        grid=grid,
        in_specs=in_specs,
        out_specs=out_specs,
        scratch_shapes=scratch_shapes,
    )

    cost = pl.CostEstimate(
        flops=2 * Mp * Np * Kp,
        transcendentals=0,
        bytes_accessed=(itemsize * (Mp * Kp + Kp * Np)
                        + 4 * (Np + 2 * Mp * Np)),
    )

    out_padded = pl.pallas_call(
        kernel,
        out_shape=jax.ShapeDtypeStruct((Mp, Np), jnp.float32),
        grid_spec=grid_spec,
        compiler_params=pltpu.CompilerParams(
            dimension_semantics=dim_sems,
            vmem_limit_bytes=32 * 1024 * 1024,
        ),
        cost_estimate=cost,
    )(xp, wp, bp, noise)

    return out_padded[:B, :N], noise[:B, :N]


if __name__ == "__main__":
    # Shapes consistent with the module: x1 = torch.randn(1, 128) -> Linear(128, 128).
    B, K, N = 1, 128, 128

    key = jax.random.PRNGKey(0)
    kx, kw, kb, knoise = jax.random.split(key, 4)

    x = jax.random.normal(kx, (B, K), dtype=jnp.float32)
    # PyTorch-Linear-style uniform init (deterministic here); weight stored (K, N).
    bound = 1.0 / (K ** 0.5)
    w = jax.random.uniform(kw, (K, N), dtype=jnp.float32, minval=-bound, maxval=bound)
    b = jax.random.uniform(kb, (N,), dtype=jnp.float32, minval=-bound, maxval=bound)

    out, noise = linear_plus_noise(x, w, b, knoise)
    out = jax.block_until_ready(out)

    # Reference check (same noise tensor fed to both paths).
    ref = x @ w + b[None, :] + noise
    assert out.shape == (B, N)
    assert out.dtype == jnp.float32
    assert bool(jnp.all(jnp.isfinite(out)))
    assert bool(jnp.allclose(out, ref, atol=1e-3, rtol=1e-3))

    print("KERNEL_OK")
</pallas_src>

<mosaic_0001>
module attributes {stable_mosaic.version = 11 : i64} {
  func.func @_fused_kernel_single_k(%arg0: i32, %arg1: i32, %arg2: memref<8x128xf32, #tpu.memory_space<vmem>>, %arg3: memref<128x128xf32, #tpu.memory_space<vmem>>, %arg4: memref<1x128xf32, #tpu.memory_space<vmem>>, %arg5: memref<8x128xf32, #tpu.memory_space<vmem>>, %arg6: memref<8x128xf32, #tpu.memory_space<vmem>>) attributes {dimension_semantics = [#tpu.dimension_semantics<parallel>, #tpu.dimension_semantics<parallel>], iteration_bounds = array<i64: 1, 1>, scalar_prefetch = 0 : i64, scratch_operands = 0 : i64, tpu.core_type = #tpu.core_type<tc>, window_params = [{transform_indices = @transform_0, window_bounds = array<i64: 8, 128>}, {transform_indices = @transform_1, window_bounds = array<i64: 128, 128>}, {transform_indices = @transform_2, window_bounds = array<i64: 1, 128>}, {transform_indices = @transform_3, window_bounds = array<i64: 8, 128>}, {transform_indices = @transform_4, window_bounds = array<i64: 8, 128>}]} {
    %c0 = arith.constant 0 : index
    %c0_0 = arith.constant 0 : index
    %0 = vector.load %arg2[%c0, %c0_0] : memref<8x128xf32, #tpu.memory_space<vmem>>, vector<8x128xf32>
    %c0_1 = arith.constant 0 : index
    %c0_2 = arith.constant 0 : index
    %1 = vector.load %arg3[%c0_1, %c0_2] : memref<128x128xf32, #tpu.memory_space<vmem>>, vector<128x128xf32>
    %cst = arith.constant dense<0.000000e+00> : vector<8x128xf32>
    %2 = tpu.matmul %0, %1, %cst {dimension_numbers = #tpu.dot_dimension_numbers<[1], [0], [0], [1], [0, 0, 1, 1], [], []>} : vector<8x128xf32>, vector<128x128xf32>, vector<8x128xf32> -> vector<8x128xf32>
    %c0_3 = arith.constant 0 : index
    %c0_4 = arith.constant 0 : index
    %3 = vector.load %arg4[%c0_3, %c0_4] : memref<1x128xf32, #tpu.memory_space<vmem>>, vector<1x128xf32>
    %4 = vector.broadcast %3 : vector<1x128xf32> to vector<8x128xf32>
    %5 = arith.addf %2, %4 : vector<8x128xf32>
    %c0_5 = arith.constant 0 : index
    %c0_6 = arith.constant 0 : index
    %6 = vector.load %arg5[%c0_5, %c0_6] : memref<8x128xf32, #tpu.memory_space<vmem>>, vector<8x128xf32>
    %7 = arith.addf %5, %6 : vector<8x128xf32>
    %c0_7 = arith.constant 0 : index
    %c0_8 = arith.constant 0 : index
    %8 = vector.load %arg6[%c0_7, %c0_8] : memref<8x128xf32, #tpu.memory_space<vmem>>, vector<8x128xf32>
    tpu.vector_store %arg6[%c0_7, %c0_8], %7 {strides = array<i32>} : memref<8x128xf32, #tpu.memory_space<vmem>>, vector<8x128xf32>,
    return
  }
  func.func @transform_0(%arg0: i32, %arg1: i32) -> (i32, i32) {
    %c0_i32 = arith.constant 0 : i32
    %c0_i32_0 = arith.constant 0 : i32
    return %arg0, %c0_i32 : i32, i32
  }
  func.func @transform_1(%arg0: i32, %arg1: i32) -> (i32, i32) {
    %c0_i32 = arith.constant 0 : i32
    %c0_i32_0 = arith.constant 0 : i32
    return %c0_i32, %arg1 : i32, i32
  }
  func.func @transform_2(%arg0: i32, %arg1: i32) -> (i32, i32) {
    %c0_i32 = arith.constant 0 : i32
    %c0_i32_0 = arith.constant 0 : i32
    return %c0_i32, %arg1 : i32, i32
  }
  func.func @transform_3(%arg0: i32, %arg1: i32) -> (i32, i32) {
    %c0_i32 = arith.constant 0 : i32
    return %arg0, %arg1 : i32, i32
  }
  func.func @transform_4(%arg0: i32, %arg1: i32) -> (i32, i32) {
    %c0_i32 = arith.constant 0 : i32
    return %arg0, %arg1 : i32, i32
  }
}

</mosaic_0001>

<llo_original>
// kernel: linear_plus_noise.1
$region0: #{linear_plus_noise.1}
  #allocation0 [shape = 'u32[]', space=smem, size = 0x4, offset = 0x4, fixed_abs, tag = 'smem constant byte address 0x4 - core index']
  #allocation1 [shape = 'u32[144,128]{1,0:T(1,128)}', space=vmem, size = 0x12000, scoped, tag = 'internal scratch']
  %s0 = inlined_call_operand.vmem [shape: f32[8,128], index: 0, kind: input, shape index: {}]
  %s1 = inlined_call_operand.hbm [shape: f32[128,128], index: 1, kind: input, shape index: {}]
  %s2 = inlined_call_operand.vmem [shape: f32[1,128], index: 2, kind: input, shape index: {}]
  %s3 = inlined_call_operand.vmem [shape: f32[8,128], index: 3, kind: input, shape index: {}]
  %s4 = inlined_call_operand.vmem [shape: f32[8,128], index: 4, kind: output, shape index: {}]
  %s5 = sld [smem:[#allocation0]]
  $region30: #{linear_plus_noise.1} parent=0
    _
  %s7 = ssub.s32 1, %s5
  %s8 = scalar_select 0, %s7, %s5
  $region1: #{linear_plus_noise.1} parent=0
    #allocation2 [shape = 'u8[65536]{0}', space=vmem, size = 0x10000, scoped, tag = 'input window, operand 1, single buffered']
    #allocation3 [shape = 's32[1]{0}', space=sflag, size = 0x4, scoped, tag = 'scoped memory for linear_plus_noise.1']
    %9 = vsyncpa [#allocation3], 0
    // Predicated region
    $region2: #{linear_plus_noise.1} parent=1 // pred_check
      _
    $region3: #{linear_plus_noise.1} parent=1 // pred_check_branch
      %11 = sbr.rel (0) target = $region5
    $region4: #{linear_plus_noise.1} parent=1 // pred_region
      _
    $region5: #{linear_plus_noise.1} parent=1 // pred_fallthru
      _
    // Predicated region
    $region6: #{linear_plus_noise.1} parent=1 // pred_check
      _
    $region7: #{linear_plus_noise.1} parent=1 // pred_check_branch
      %13 = sbr.rel (0) target = $region9
    $region8: #{linear_plus_noise.1} parent=1 // pred_region
      %s15 = ssub.s32 2048, 2048
      %16 = vsyncadd [#allocation3], %s15
      %s17 = sshll.u32 [#allocation2], 4
      %s18 = int_to_ptr.vmem [resolvable:$true] %s17
      %23 = dma.hbm_to_vmem [thread:$0]  %s1, 2048, %s18, [#allocation3], 128, 128, 8
    $region9: #{linear_plus_noise.1} parent=1 // pred_fallthru
      _
    // Predicated region
    $region10: #{linear_plus_noise.1} parent=1 // pred_check
      _
    $region11: #{linear_plus_noise.1} parent=1 // pred_check_branch
      %25 = sbr.rel (0) target = $region13
    $region12: #{linear_plus_noise.1} parent=1 // pred_region
      _
    $region13: #{linear_plus_noise.1} parent=1 // pred_fallthru
      _
    // Predicated region
    $region14: #{linear_plus_noise.1} parent=1 // pred_check
      _
    $region15: #{linear_plus_noise.1} parent=1 // pred_check_branch
      %27 = sbr.rel (0) target = $region17
    $region16: #{linear_plus_noise.1} parent=1 // pred_region
      _
    $region17: #{linear_plus_noise.1} parent=1 // pred_fallthru
      _
    // Predicated region
    $region18: #{linear_plus_noise.1} parent=1 // pred_check
      _
    $region19: #{linear_plus_noise.1} parent=1 // pred_check_branch
      %29 = sbr.rel (0) target = $region21
    $region20: #{linear_plus_noise.1} parent=1 // pred_region
      %30 = dma.done [#allocation3], 2048
    $region21: #{linear_plus_noise.1} parent=1 // pred_fallthru
      _
    %v31 = vld [vmem:[%s0] sm:$0xff]
    %v32 = vld [vmem:[#allocation2] sm:$0xff]
    %v33 = vld [vmem:[#allocation2 + $0x8] sm:$0xff]
    %v34 = vld [vmem:[#allocation2 + $0x10] sm:$0xff]
    %v35 = vld [vmem:[#allocation2 + $0x18] sm:$0xff]
    %v36 = vld [vmem:[#allocation2 + $0x20] sm:$0xff]
    %v37 = vld [vmem:[#allocation2 + $0x28] sm:$0xff]
    %v38 = vld [vmem:[#allocation2 + $0x30] sm:$0xff]
    %v39 = vld [vmem:[#allocation2 + $0x38] sm:$0xff]
    %v40 = vld [vmem:[#allocation2 + $0x40] sm:$0xff]
    %v41 = vld [vmem:[#allocation2 + $0x48] sm:$0xff]
    %v42 = vld [vmem:[#allocation2 + $0x50] sm:$0xff]
    %v43 = vld [vmem:[#allocation2 + $0x58] sm:$0xff]
    %v44 = vld [vmem:[#allocation2 + $0x60] sm:$0xff]
    %v45 = vld [vmem:[#allocation2 + $0x68] sm:$0xff]
    %v46 = vld [vmem:[#allocation2 + $0x70] sm:$0xff]
    %v47 = vld [vmem:[#allocation2 + $0x78] sm:$0xff]
    %v48 = vld [vmem:[%s2] sm:$0x1]
    %v50 = vlaneseq
    %v51 = vshrl.u32 %v50, 7
    %v52 = vsub.s32 0, %v51
    %v53 = vrot.slane %v48, %v52
    %55 = vmatprep.subr.mxu0 0.0
    %56 = vmatpush1.msra.mxu0 %v32
    %57 = vmatprep.subr.mxu0 0.0
    %58 = vmatpush1.msra.mxu0 %v33
    %59 = vmatprep.subr.mxu0 0.0
    %60 = vmatpush1.msra.mxu0 %v34
    %61 = vmatprep.subr.mxu0 0.0
    %62 = vmatpush1.msra.mxu0 %v35
    %63 = vmatprep.subr.mxu0 0.0
    %64 = vmatpush1.msra.mxu0 %v36
    %65 = vmatprep.subr.mxu0 0.0
    %66 = vmatpush1.msra.mxu0 %v37
    %67 = vmatprep.subr.mxu0 0.0
    %68 = vmatpush1.msra.mxu0 %v38
    %69 = vmatprep.subr.mxu0 0.0
    %70 = vmatpush1.msra.mxu0 %v39
    %71 = vmatprep.subr.mxu0 0.0
    %72 = vmatpush1.msra.mxu0 %v40
    %73 = vmatprep.subr.mxu0 0.0
    %74 = vmatpush1.msra.mxu0 %v41
    %75 = vmatprep.subr.mxu0 0.0
    %76 = vmatpush1.msra.mxu0 %v42
    %77 = vmatprep.subr.mxu0 0.0
    %78 = vmatpush1.msra.mxu0 %v43
    %79 = vmatprep.subr.mxu0 0.0
    %80 = vmatpush1.msra.mxu0 %v44
    %81 = vmatprep.subr.mxu0 0.0
    %82 = vmatpush1.msra.mxu0 %v45
    %83 = vmatprep.subr.mxu0 0.0
    %84 = vmatpush1.msra.mxu0 %v46
    %85 = vmatprep.subr.mxu0 0.0
    %86 = vmatpush1.msra.mxu0 %v47
    %87 = vmatprep.subr.mxu0 0.0
    %88 = vmatpush1.msra.mxu0 0.0
    %89 = vmatprep.subr.mxu0 0.0
    %90 = vmatpush1.msra.mxu0 0.0
    %91 = vmatprep.subr.mxu0 0.0
    %92 = vmatpush1.msra.mxu0 0.0
    %93 = vmatprep.subr.mxu0 0.0
    %94 = vmatpush1.msra.mxu0 0.0
    %95 = vmatprep.subr.mxu0 0.0
    %96 = vmatpush1.msra.mxu0 0.0
    %97 = vmatprep.subr.mxu0 0.0
    %98 = vmatpush1.msra.mxu0 0.0
    %99 = vmatprep.subr.mxu0 0.0
    %100 = vmatpush1.msra.mxu0 0.0
    %101 = vmatprep.subr.mxu0 0.0
    %102 = vmatpush1.msra.mxu0 0.0
    %103 = vmatprep.subr.mxu0 0.0
    %104 = vmatpush1.msra.mxu0 0.0
    %105 = vmatprep.subr.mxu0 0.0
    %106 = vmatpush1.msra.mxu0 0.0
    %107 = vmatprep.subr.mxu0 0.0
    %108 = vmatpush1.msra.mxu0 0.0
    %109 = vmatprep.subr.mxu0 0.0
    %110 = vmatpush1.msra.mxu0 0.0
    %111 = vmatprep.subr.mxu0 0.0
    %112 = vmatpush1.msra.mxu0 0.0
    %113 = vmatprep.subr.mxu0 0.0
    %114 = vmatpush1.msra.mxu0 0.0
    %115 = vmatprep.subr.mxu0 0.0
    %116 = vmatpush1.msra.mxu0 0.0
    %117 = vmatprep.subr.mxu0 0.0
    %118 = vmatpush1.msra.mxu0 0.0
    %119 = vmatprep.mubr.f32.mxu0 0.0
    %120 = vmatmul.mubr.f32.gmra.mrb[0].mxu0 %v31
    %v121 = vpop.f32.mrb[0].mxu0
    %v122 = vadd.f32 %v53, %v121
    %v123 = vpop.f32.mrb[0].mxu0
    %124 = vdwg.mxu0
    %v125 = vld [vmem:[%s3] sm:$0xff]
    %v126 = vadd.f32 %v122, %v125
    %127 = vst [vmem:[%s4] sm:$0xff] %v126
    // Predicated region
    $region22: #{linear_plus_noise.1} parent=1 // pred_check
      _
    $region23: #{linear_plus_noise.1} parent=1 // pred_check_branch
      %129 = sbr.rel (0) target = $region25
    $region24: #{linear_plus_noise.1} parent=1 // pred_region
      _
    $region25: #{linear_plus_noise.1} parent=1 // pred_fallthru
      _
    // Predicated region
    $region26: #{linear_plus_noise.1} parent=1 // pred_check
      _
    $region27: #{linear_plus_noise.1} parent=1 // pred_check_branch
      %131 = sbr.rel (0) target = $region29
    $region28: #{linear_plus_noise.1} parent=1 // pred_region
      _
    $region29: #{linear_plus_noise.1} parent=1 // pred_fallthru
      _
    %132 = vsyncpa [#allocation3], 1

</llo_original>
